<compile_context>
chip_gen: v7x
topology: tpu7x:2x2x1
jax: 0.10.0
libtpu: 0.0.40
codegen_flags: <defaults>
</compile_context>

<pallas_src>
import functools
import math

import jax
import jax.numpy as jnp
from jax.experimental import pallas as pl
from jax.experimental.pallas import tpu as pltpu


# -----------------------------------------------------------------------------
# Constants for the spectral loss
# -----------------------------------------------------------------------------
G = 0.0010705
TWO_PI = 2.0 * math.pi
ABS_SCALE = 8.5 - 0.001
N_OMEGA = 500                       # original PyTorch grid length
N_OMEGA_PAD = 512                   # 4 full 128-lane vregs per row
OMEGA_SENTINEL = 1.0e6              # pad lanes: exp arg ~ -1e10..-1e15 -> exactly 0
_LO = G * 520.0 - 5.0 * 0.009
_HI = G * 536.0 + 5.0 * 0.009
DOMEGA = TWO_PI * (_HI - _LO) / (N_OMEGA - 1)   # constant grid step (baked in)
OMEGA0 = TWO_PI * _LO

MAX_TB = 1024                       # v7x-safe batch-tile cap (64 MiB VMEM there)


def _tiles(batch):
    """Pick (tile_rows, num_tiles): one big tile when possible, else 1024-row tiles."""
    padded = -(-batch // 8) * 8
    if padded <= MAX_TB:
        return padded, 1
    padded = -(-batch // MAX_TB) * MAX_TB
    return MAX_TB, padded // MAX_TB


# -----------------------------------------------------------------------------
# 1) linearRegression.forward:  out = x @ W^T + b   (torch.nn.Linear semantics)
#    VPU formulation: per-output-column broadcast-multiply + lane reduce.
# -----------------------------------------------------------------------------
def _linear_kernel(x_ref, w_ref, b_ref, out_ref):
    x = x_ref[...]                                        # (B, In) f32
    out_f = out_ref.shape[-1]
    lane = jax.lax.broadcasted_iota(jnp.int32, out_ref.shape, 1)
    acc = jnp.zeros(out_ref.shape, jnp.float32)
    for o in range(out_f):                                # small, unrolled at trace
        col = jnp.sum(x * w_ref[o:o + 1, :], axis=-1, keepdims=True)   # (B, 1)
        acc = jnp.where(lane == o, col, acc)
    out_ref[...] = (acc + b_ref[...]).astype(out_ref.dtype)


def linear_forward(x, w, b):
    """x: (B, In) f32, w: (Out, In) f32, b: (Out,) f32  ->  (B, Out) f32."""
    m = x.shape[0]
    out_f = w.shape[0]
    return pl.pallas_call(
        _linear_kernel,
        out_shape=jax.ShapeDtypeStruct((m, out_f), x.dtype),
        in_specs=[pl.BlockSpec(memory_space=pltpu.MemorySpace.VMEM)] * 3,
        out_specs=pl.BlockSpec(memory_space=pltpu.MemorySpace.VMEM),
    )(x, w, b.reshape(1, out_f))


# -----------------------------------------------------------------------------
# 2) SLoss helpers (shared by the standalone and the fused kernel)
# -----------------------------------------------------------------------------
def _omega_row():
    """(1, 512) omega grid generated in-kernel; lanes >= 500 hold a finite sentinel."""
    lane = jax.lax.broadcasted_iota(jnp.int32, (1, N_OMEGA_PAD), 1)
    omega = lane.astype(jnp.float32) * DOMEGA + OMEGA0
    return jnp.where(lane < N_OMEGA, omega, OMEGA_SENTINEL)


def _row_err(p0, amp_a, cen_a, wid_a, y):
    """Per-row loss term. p0/amp_a/cen_a/wid_a: (TB,1); y: (TB,4). Returns (TB,1)."""
    omega = _omega_row()                                   # (1, 512)

    # Hoisted per-row scalars; only TB exact reciprocals (off the wide EUP path).
    c_a = (TWO_PI * G) * cen_a
    inv_a = 1.0 / (TWO_PI * wid_a)
    s_a = -0.5 * inv_a * inv_a

    c_b = (TWO_PI * G) * y[:, 2:3]
    inv_b = 1.0 / (TWO_PI * y[:, 3:4])
    s_b = -0.5 * inv_b * inv_b

    d_a = omega - c_a                                      # (TB, 512) via broadcast
    d_b = omega - c_b
    g_a = amp_a * jnp.exp(s_a * (d_a * d_a))               # pad lanes underflow to 0
    g_b = y[:, 1:2] * jnp.exp(s_b * (d_b * d_b))

    area = jnp.sum(jnp.abs(g_b - g_a), axis=-1, keepdims=True) * DOMEGA
    return jnp.abs(p0 - y[:, 0:1]) * ABS_SCALE + area      # (TB, 1)


def _masked_tile_sum_store(err, out_ref, batch, tb):
    """Zero out pad rows, reduce the tile, write a lane-dense (1,1,128) partial."""
    rows = pl.program_id(0) * tb + jax.lax.broadcasted_iota(jnp.int32, err.shape, 0)
    err = jnp.where(rows < batch, err, 0.0)
    tile_sum = jnp.sum(err, axis=0, keepdims=True)          # (1, 1)
    out_ref[...] = jnp.broadcast_to(tile_sum.reshape(1, 1, 1), out_ref.shape)


def _pad_rows(a, total_rows):
    pad = total_rows - a.shape[0]
    if pad:
        a = jnp.concatenate([a, jnp.zeros((pad,) + a.shape[1:], a.dtype)], axis=0)
    return a


# -----------------------------------------------------------------------------
# 2a) Standalone SLoss on a precomputed yhat
# -----------------------------------------------------------------------------
def _sloss_kernel(batch, tb, yhat_ref, y_ref, out_ref):
    yhat = yhat_ref[...]                                    # (TB, 4)
    err = _row_err(yhat[:, 0:1], yhat[:, 1:2], yhat[:, 2:3], yhat[:, 3:4], y_ref[...])
    _masked_tile_sum_store(err, out_ref, batch, tb)


def sloss(yhat, y):
    """yhat, y: (B, 4) f32  ->  scalar f32 (mean per-sample error)."""
    batch = yhat.shape[0]
    tb, num_tiles = _tiles(batch)
    total = tb * num_tiles
    yhat = _pad_rows(yhat, total)
    y = _pad_rows(y, total)

    partials = pl.pallas_call(
        functools.partial(_sloss_kernel, batch, tb),
        out_shape=jax.ShapeDtypeStruct((num_tiles, 1, 128), jnp.float32),
        grid=(num_tiles,),
        in_specs=[pl.BlockSpec((tb, 4), lambda i: (i, 0)),
                  pl.BlockSpec((tb, 4), lambda i: (i, 0))],
        out_specs=pl.BlockSpec((1, 1, 128), lambda i: (i, 0, 0)),
        compiler_params=pltpu.CompilerParams(dimension_semantics=("parallel",)),
    )(yhat, y)
    return jnp.sum(partials[:, 0, 0]) / batch


# -----------------------------------------------------------------------------
# 2b) Fused forward + SLoss:  loss(x @ W^T + b, y) in one kernel
# -----------------------------------------------------------------------------
def _fused_sloss_kernel(batch, tb, x_ref, w_ref, b_ref, y_ref, out_ref):
    x = x_ref[...]                                          # (TB, In) f32

    def lin_col(o):                                         # VPU: (TB,In)*(1,In) -> (TB,1)
        return jnp.sum(x * w_ref[o:o + 1, :], axis=-1, keepdims=True) + b_ref[:, o:o + 1]

    err = _row_err(lin_col(0), lin_col(1), lin_col(2), lin_col(3), y_ref[...])
    _masked_tile_sum_store(err, out_ref, batch, tb)


def fused_loss(x, w, b, y):
    """x: (B, In), w: (4, In), b: (4,), y: (B, 4)  ->  scalar f32 mean loss."""
    assert w.shape[0] == 4, "SLoss expects 4 predicted parameters per sample"
    batch, in_f = x.shape
    tb, num_tiles = _tiles(batch)
    total = tb * num_tiles
    x = _pad_rows(x, total)
    y = _pad_rows(y, total)
    b2 = b.reshape(1, 4)

    partials = pl.pallas_call(
        functools.partial(_fused_sloss_kernel, batch, tb),
        out_shape=jax.ShapeDtypeStruct((num_tiles, 1, 128), jnp.float32),
        grid=(num_tiles,),
        in_specs=[
            pl.BlockSpec((tb, in_f), lambda i: (i, 0)),     # pipelined activations
            pl.BlockSpec((4, in_f), lambda i: (0, 0)),      # resident weights
            pl.BlockSpec((1, 4), lambda i: (0, 0)),         # resident bias
            pl.BlockSpec((tb, 4), lambda i: (i, 0)),        # pipelined targets
        ],
        out_specs=pl.BlockSpec((1, 1, 128), lambda i: (i, 0, 0)),
        compiler_params=pltpu.CompilerParams(dimension_semantics=("parallel",)),
    )(x, w, b2, y)
    return jnp.sum(partials[:, 0, 0]) / batch


# -----------------------------------------------------------------------------
# Pure-JAX references (mirror the original PyTorch code)
# -----------------------------------------------------------------------------
def linear_ref(x, w, b):
    return jnp.dot(x, w.T, precision=jax.lax.Precision.HIGHEST) + b


def sloss_ref(yhat_batch, y_batch):
    omega = TWO_PI * jnp.linspace(_LO, _HI, N_OMEGA, dtype=jnp.float32)
    domega = omega[1] - omega[0]

    def one(p):
        return p[1] * jnp.exp(-0.5 * ((omega - TWO_PI * G * p[2]) / (TWO_PI * p[3])) ** 2)

    errs = []
    for i in range(yhat_batch.shape[0]):
        ga = one(yhat_batch[i])
        gb = one(y_batch[i])
        errs.append(jnp.abs(yhat_batch[i, 0] - y_batch[i, 0]) * ABS_SCALE
                    + jnp.sum(jnp.abs(gb - ga)) * domega)
    return sum(errs) / yhat_batch.shape[0]


if __name__ == "__main__":
    keys = jax.random.split(jax.random.PRNGKey(0), 12)

    # ---- 1) linearRegression.forward (spec module) ---------------------------
    B_LIN, IN_F, OUT_F = 8, 16, 4
    x_lin = jax.random.normal(keys[0], (B_LIN, IN_F), jnp.float32)
    w = 0.1 * jax.random.normal(keys[1], (OUT_F, IN_F), jnp.float32)
    b = 0.1 * jax.random.normal(keys[2], (OUT_F,), jnp.float32)

    out_lin = jax.block_until_ready(linear_forward(x_lin, w, b))
    ref_lin = linear_ref(x_lin, w, b)
    assert jnp.allclose(out_lin, ref_lin, rtol=1e-5, atol=1e-5), (out_lin, ref_lin)

    # ---- 2a) Standalone SLoss on realistic parameter vectors ----------------
    B = 32
    k1, k2, k3, k4, k5, k6, k7, k8 = keys[3:11]
    yhat = jnp.stack(
        [jax.random.uniform(k1, (B,), minval=0.0, maxval=2.0),
         jax.random.uniform(k2, (B,), minval=0.5, maxval=1.5),
         jax.random.uniform(k3, (B,), minval=520.0, maxval=536.0),
         jax.random.uniform(k4, (B,), minval=0.004, maxval=0.009)],
        axis=1).astype(jnp.float32)
    y = jnp.stack(
        [jax.random.uniform(k5, (B,), minval=0.0, maxval=2.0),
         jax.random.uniform(k6, (B,), minval=0.5, maxval=1.5),
         jax.random.uniform(k7, (B,), minval=520.0, maxval=536.0),
         jax.random.uniform(k8, (B,), minval=0.004, maxval=0.009)],
        axis=1).astype(jnp.float32)

    out_loss = jax.block_until_ready(sloss(yhat, y))
    ref_loss = jax.block_until_ready(sloss_ref(yhat, y))
    assert jnp.allclose(out_loss, ref_loss, rtol=1e-5, atol=1e-5), (out_loss, ref_loss)

    # ---- 2b) Fused forward + SLoss (the training-step hot path) -------------
    x_fit = jax.random.normal(keys[11], (B, IN_F), jnp.float32)
    out_fused = jax.block_until_ready(fused_loss(x_fit, w, b, y))
    ref_fused = jax.block_until_ready(sloss_ref(linear_ref(x_fit, w, b), y))
    assert jnp.allclose(out_fused, ref_fused, rtol=1e-5, atol=1e-5), (out_fused, ref_fused)

    print("KERNEL_OK")
</pallas_src>

<mosaic_0001>
module attributes {stable_mosaic.version = 11 : i64} {
  func.func @_linear_kernel(%arg0: memref<8x16xf32, #tpu.memory_space<vmem>>, %arg1: memref<4x16xf32, #tpu.memory_space<vmem>>, %arg2: memref<1x4xf32, #tpu.memory_space<vmem>>, %arg3: memref<8x4xf32, #tpu.memory_space<vmem>>) attributes {dimension_semantics = [], scalar_prefetch = 0 : i64, scratch_operands = 0 : i64, tpu.core_type = #tpu.core_type<tc>} {
    %c0 = arith.constant 0 : index
    %c0_0 = arith.constant 0 : index
    %0 = vector.load %arg0[%c0, %c0_0] : memref<8x16xf32, #tpu.memory_space<vmem>>, vector<8x16xf32>
    %1 = tpu.iota {dimensions = array<i32: 1>} : vector<8x4xi32>
    %cst = arith.constant 0.000000e+00 : f32
    %2 = vector.broadcast %cst : f32 to vector<8x4xf32>
    %c0_1 = arith.constant 0 : index
    %c0_2 = arith.constant 0 : index
    %3 = vector.load %arg1[%c0_1, %c0_2] : memref<4x16xf32, #tpu.memory_space<vmem>>, vector<1x16xf32>
    %4 = vector.broadcast %3 : vector<1x16xf32> to vector<8x16xf32>
    %5 = arith.mulf %0, %4 : vector<8x16xf32>
    %cst_3 = arith.constant dense<0.000000e+00> : vector<8xf32>
    %6 = vector.multi_reduction <add>, %5, %cst_3 [1] : vector<8x16xf32> to vector<8xf32>
    %7 = vector.shape_cast %6 : vector<8xf32> to vector<8x1xf32>
    %c0_i32 = arith.constant 0 : i32
    %8 = vector.broadcast %c0_i32 : i32 to vector<8x4xi32>
    %9 = arith.cmpi eq, %1, %8 : vector<8x4xi32>
    %10 = vector.shape_cast %7 : vector<8x1xf32> to vector<8x1xf32>
    %11 = vector.broadcast %10 : vector<8x1xf32> to vector<8x4xf32>
    %12 = arith.select %9, %11, %2 : vector<8x4xi1>, vector<8x4xf32>
    %c1 = arith.constant 1 : index
    %c0_4 = arith.constant 0 : index
    %13 = vector.load %arg1[%c1, %c0_4] : memref<4x16xf32, #tpu.memory_space<vmem>>, vector<1x16xf32>
    %14 = vector.broadcast %13 : vector<1x16xf32> to vector<8x16xf32>
    %15 = arith.mulf %0, %14 : vector<8x16xf32>
    %cst_5 = arith.constant dense<0.000000e+00> : vector<8xf32>
    %16 = vector.multi_reduction <add>, %15, %cst_5 [1] : vector<8x16xf32> to vector<8xf32>
    %17 = vector.shape_cast %16 : vector<8xf32> to vector<8x1xf32>
    %c1_i32 = arith.constant 1 : i32
    %18 = vector.broadcast %c1_i32 : i32 to vector<8x4xi32>
    %19 = arith.cmpi eq, %1, %18 : vector<8x4xi32>
    %20 = vector.shape_cast %17 : vector<8x1xf32> to vector<8x1xf32>
    %21 = vector.broadcast %20 : vector<8x1xf32> to vector<8x4xf32>
    %22 = arith.select %19, %21, %12 : vector<8x4xi1>, vector<8x4xf32>
    %c2 = arith.constant 2 : index
    %c0_6 = arith.constant 0 : index
    %23 = vector.load %arg1[%c2, %c0_6] : memref<4x16xf32, #tpu.memory_space<vmem>>, vector<1x16xf32>
    %24 = vector.broadcast %23 : vector<1x16xf32> to vector<8x16xf32>
    %25 = arith.mulf %0, %24 : vector<8x16xf32>
    %cst_7 = arith.constant dense<0.000000e+00> : vector<8xf32>
    %26 = vector.multi_reduction <add>, %25, %cst_7 [1] : vector<8x16xf32> to vector<8xf32>
    %27 = vector.shape_cast %26 : vector<8xf32> to vector<8x1xf32>
    %c2_i32 = arith.constant 2 : i32
    %28 = vector.broadcast %c2_i32 : i32 to vector<8x4xi32>
    %29 = arith.cmpi eq, %1, %28 : vector<8x4xi32>
    %30 = vector.shape_cast %27 : vector<8x1xf32> to vector<8x1xf32>
    %31 = vector.broadcast %30 : vector<8x1xf32> to vector<8x4xf32>
    %32 = arith.select %29, %31, %22 : vector<8x4xi1>, vector<8x4xf32>
    %c3 = arith.constant 3 : index
    %c0_8 = arith.constant 0 : index
    %33 = vector.load %arg1[%c3, %c0_8] : memref<4x16xf32, #tpu.memory_space<vmem>>, vector<1x16xf32>
    %34 = vector.broadcast %33 : vector<1x16xf32> to vector<8x16xf32>
    %35 = arith.mulf %0, %34 : vector<8x16xf32>
    %cst_9 = arith.constant dense<0.000000e+00> : vector<8xf32>
    %36 = vector.multi_reduction <add>, %35, %cst_9 [1] : vector<8x16xf32> to vector<8xf32>
    %37 = vector.shape_cast %36 : vector<8xf32> to vector<8x1xf32>
    %c3_i32 = arith.constant 3 : i32
    %38 = vector.broadcast %c3_i32 : i32 to vector<8x4xi32>
    %39 = arith.cmpi eq, %1, %38 : vector<8x4xi32>
    %40 = vector.shape_cast %37 : vector<8x1xf32> to vector<8x1xf32>
    %41 = vector.broadcast %40 : vector<8x1xf32> to vector<8x4xf32>
    %42 = arith.select %39, %41, %32 : vector<8x4xi1>, vector<8x4xf32>
    %c0_10 = arith.constant 0 : index
    %c0_11 = arith.constant 0 : index
    %43 = vector.load %arg2[%c0_10, %c0_11] : memref<1x4xf32, #tpu.memory_space<vmem>>, vector<1x4xf32>
    %44 = vector.broadcast %43 : vector<1x4xf32> to vector<8x4xf32>
    %45 = arith.addf %42, %44 : vector<8x4xf32>
    %c0_12 = arith.constant 0 : index
    %c0_13 = arith.constant 0 : index
    %46 = vector.load %arg3[%c0_12, %c0_13] : memref<8x4xf32, #tpu.memory_space<vmem>>, vector<8x4xf32>
    tpu.vector_store %arg3[%c0_12, %c0_13], %45 {strides = array<i32>} : memref<8x4xf32, #tpu.memory_space<vmem>>, vector<8x4xf32>,
    return
  }
}

</mosaic_0001>

<llo_original>
// kernel: tpu_custom_call.1
$region0: #{tpu_custom_call.1}
  #allocation0 [shape = 'u32[]', space=smem, size = 0x4, offset = 0x4, fixed_abs, tag = 'smem constant byte address 0x4 - core index']
  #allocation1 [shape = 'u32[144,128]{1,0:T(1,128)}', space=vmem, size = 0x12000, scoped, tag = 'internal scratch']
  %s0 = inlined_call_operand.hbm [shape: f32[8,16], index: 0, kind: input, shape index: {}]
  %s1 = inlined_call_operand.hbm [shape: f32[4,16], index: 1, kind: input, shape index: {}]
  %s2 = inlined_call_operand.vmem [shape: f32[1,4], index: 2, kind: input, shape index: {}]
  %s3 = inlined_call_operand.vmem [shape: f32[8,4], index: 3, kind: output, shape index: {}]
  %s4 = sld [smem:[#allocation0]]
  $region30: #{tpu_custom_call.1} parent=0
    _
  %s6 = ssub.s32 1, %s4
  %s7 = scalar_select 0, %s6, %s4
  $region1: #{tpu_custom_call.1} parent=0
    #allocation2 [shape = 'u8[4096]{0}', space=vmem, size = 0x1000, scoped, tag = 'input window, operand 0, single buffered']
    #allocation3 [shape = 's32[1]{0}', space=sflag, size = 0x4, scoped, tag = 'scoped memory for tpu_custom_call.1']
    #allocation4 [shape = 'u8[2048]{0}', space=vmem, size = 0x800, scoped, tag = 'input window, operand 1, single buffered']
    #allocation5 [shape = 's32[1]{0}', space=sflag, size = 0x4, scoped, tag = 'scoped memory for tpu_custom_call.1']
    %8 = vsyncpa [#allocation3], 0
    %9 = vsyncpa [#allocation5], 0
    // Predicated region
    $region2: #{tpu_custom_call.1} parent=1 // pred_check
      _
    $region3: #{tpu_custom_call.1} parent=1 // pred_check_branch
      %11 = sbr.rel (0) target = $region5
    $region4: #{tpu_custom_call.1} parent=1 // pred_region
      %s13 = ssub.s32 128, 128
      %14 = vsyncadd [#allocation3], %s13
      %s16 = sshll.u32 [#allocation2], 4
      %s17 = int_to_ptr.vmem [resolvable:$true] %s16
      %19 = dma.hbm_to_vmem [thread:$0]  %s0, 128, %s17, [#allocation3]
    $region5: #{tpu_custom_call.1} parent=1 // pred_fallthru
      _
    // Predicated region
    $region6: #{tpu_custom_call.1} parent=1 // pred_check
      _
    $region7: #{tpu_custom_call.1} parent=1 // pred_check_branch
      %21 = sbr.rel (0) target = $region9
    $region8: #{tpu_custom_call.1} parent=1 // pred_region
      %s23 = ssub.s32 64, 64
      %24 = vsyncadd [#allocation5], %s23
      %s26 = sshll.u32 [#allocation4], 4
      %s27 = int_to_ptr.vmem [resolvable:$true] %s26
      %29 = dma.hbm_to_vmem [thread:$0]  %s1, 64, %s27, [#allocation5]
    $region9: #{tpu_custom_call.1} parent=1 // pred_fallthru
      _
    // Predicated region
    $region10: #{tpu_custom_call.1} parent=1 // pred_check
      _
    $region11: #{tpu_custom_call.1} parent=1 // pred_check_branch
      %31 = sbr.rel (0) target = $region13
    $region12: #{tpu_custom_call.1} parent=1 // pred_region
      _
    $region13: #{tpu_custom_call.1} parent=1 // pred_fallthru
      _
    // Predicated region
    $region14: #{tpu_custom_call.1} parent=1 // pred_check
      _
    $region15: #{tpu_custom_call.1} parent=1 // pred_check_branch
      %33 = sbr.rel (0) target = $region17
    $region16: #{tpu_custom_call.1} parent=1 // pred_region
      %34 = dma.done [#allocation3], 128
    $region17: #{tpu_custom_call.1} parent=1 // pred_fallthru
      _
    // Predicated region
    $region18: #{tpu_custom_call.1} parent=1 // pred_check
      _
    $region19: #{tpu_custom_call.1} parent=1 // pred_check_branch
      %36 = sbr.rel (0) target = $region21
    $region20: #{tpu_custom_call.1} parent=1 // pred_region
      %37 = dma.done [#allocation5], 64
    $region21: #{tpu_custom_call.1} parent=1 // pred_fallthru
      _
    %v38 = vld [vmem:[#allocation2] sm:$0xff]
    %v39 = vlaneseq
    %v40 = vand.u32 %v39, 127
    %v41 = vld [vmem:[#allocation4] sm:$0x1]
    %v42 = vlaneseq
    %v43 = vshrl.u32 %v42, 7
    %v44 = vsub.s32 0, %v43
    %v45 = vrot.slane %v41, %v44
    %v46 = vmul.f32 %v38, %v45
    %vm47 = vcmask 130048
    %v48 = vsel %vm47, %v46, 0.0
    %49 = vadd.xlane.f32.xlu0 %v48
    %v50 = vpop.xlane.xlu0 %49
    %vm51 = vcmp.eq.s32.totalorder %v40, 0
    %v52 = vsel %vm51, %v50, 0.0
    %v53 = vld [vmem:[#allocation4 + $0x1] sm:$0x1]
    %v54 = vlaneseq
    %v55 = vshrl.u32 %v54, 7
    %v56 = vsub.s32 0, %v55
    %v57 = vrot.slane %v53, %v56
    %v58 = vmul.f32 %v38, %v57
    %v59 = vsel %vm47, %v58, 0.0
    %60 = vadd.xlane.f32.xlu0 %v59
    %v61 = vpop.xlane.xlu0 %60
    %vm62 = vcmp.eq.s32.totalorder %v40, 1
    %v63 = vsel %vm62, %v61, %v52
    %v64 = vld [vmem:[#allocation4 + $0x2] sm:$0x1]
    %v65 = vlaneseq
    %v66 = vshrl.u32 %v65, 7
    %v67 = vsub.s32 0, %v66
    %v68 = vrot.slane %v64, %v67
    %v69 = vmul.f32 %v38, %v68
    %v70 = vsel %vm47, %v69, 0.0
    %71 = vadd.xlane.f32.xlu0 %v70
    %v72 = vpop.xlane.xlu0 %71
    %vm73 = vcmp.eq.s32.totalorder %v40, 2
    %v74 = vsel %vm73, %v72, %v63
    %v75 = vld [vmem:[#allocation4 + $0x3] sm:$0x1]
    %v76 = vlaneseq
    %v77 = vshrl.u32 %v76, 7
    %v78 = vsub.s32 0, %v77
    %v79 = vrot.slane %v75, %v78
    %v80 = vmul.f32 %v38, %v79
    %v81 = vsel %vm47, %v80, 0.0
    %82 = vadd.xlane.f32.xlu0 %v81
    %v83 = vpop.xlane.xlu0 %82
    %vm84 = vcmp.eq.s32.totalorder %v40, 3
    %v85 = vsel %vm84, %v83, %v74
    %v86 = vld [vmem:[%s2] sm:$0x1]
    %v88 = vlaneseq
    %v89 = vshrl.u32 %v88, 7
    %v90 = vsub.s32 0, %v89
    %v91 = vrot.slane %v86, %v90
    %v93 = vadd.f32 %v85, %v91
    %vm94 = vcmask 31744
    %95 = vst.msk [vmem:[%s3] sm:$0xff] %vm94, %v93
    // Predicated region
    $region22: #{tpu_custom_call.1} parent=1 // pred_check
      _
    $region23: #{tpu_custom_call.1} parent=1 // pred_check_branch
      %97 = sbr.rel (0) target = $region25
    $region24: #{tpu_custom_call.1} parent=1 // pred_region
      _
    $region25: #{tpu_custom_call.1} parent=1 // pred_fallthru
      _
    // Predicated region
    $region26: #{tpu_custom_call.1} parent=1 // pred_check
      _
    $region27: #{tpu_custom_call.1} parent=1 // pred_check_branch
      %99 = sbr.rel (0) target = $region29
    $region28: #{tpu_custom_call.1} parent=1 // pred_region
      _
    $region29: #{tpu_custom_call.1} parent=1 // pred_fallthru
      _
    %100 = vsyncpa [#allocation3], 1
    %101 = vsyncpa [#allocation5], 1

</llo_original>
